<compile_context>
chip_gen: v6e
topology: v6e:2x2x1
jax: 0.10.0
libtpu: 0.0.40
codegen_flags: <defaults>
</compile_context>

<pallas_src>
import functools

import jax
import jax.numpy as jnp
from jax.experimental import pallas as pl
from jax.experimental.pallas import tpu as pltpu

B, A, D = 2, 4, 16   # batch, #categorical variables, #categories per variable


def categorical_kl_kernel(p_ref, q_ref, kl_ref, *, inv_b):
    """p_ref, q_ref: (1, B*A*D) VMEM blocks (any float dtype).
    kl_ref: (1, 1) f32 scalar output in SMEM.
    """
    # Upcast on load: element math / logs / accumulation all in f32.
    p = p_ref[...].astype(jnp.float32)
    q = q_ref[...].astype(jnp.float32)
    # KL contribution per element (logs on the EUP, mul/sub on the VPU).
    elem = p * (jnp.log(p) - jnp.log(q))                 # (1, B*A*D)
    # sum(-1).sum(-1) over (A, D) followed by mean over B  ==  total_sum / B.
    # One cross-lane XLU reduce; inv_b is a compile-time constant.
    kl_ref[0, 0] = jnp.sum(elem) * inv_b


def categorical_kl_loss(P, Q):
    """P, Q: (B, A, D) categorical probabilities.  Returns scalar f32 KL."""
    Bn = P.shape[0]
    n = P.size
    # Lane-dense single row: for the module's sizes n == 128 (one vreg row).
    p2 = P.reshape(1, n)
    q2 = Q.reshape(1, n)
    kernel = functools.partial(categorical_kl_kernel, inv_b=1.0 / Bn)
    out = pl.pallas_call(
        kernel,
        out_shape=jax.ShapeDtypeStruct((1, 1), jnp.float32),
        in_specs=[
            pl.BlockSpec(memory_space=pltpu.MemorySpace.VMEM),
            pl.BlockSpec(memory_space=pltpu.MemorySpace.VMEM),
        ],
        out_specs=pl.BlockSpec(memory_space=pltpu.MemorySpace.SMEM),
    )(p2, q2)
    return out[0, 0]


if __name__ == "__main__":
    key = jax.random.PRNGKey(0)
    kp, kq = jax.random.split(key)
    # Valid categorical distributions along the last dim (strictly positive,
    # rows sum to 1) so the logs are finite, matching the module's usage.
    P = jax.nn.softmax(jax.random.normal(kp, (B, A, D), jnp.float32), axis=-1)
    Q = jax.nn.softmax(jax.random.normal(kq, (B, A, D), jnp.float32), axis=-1)

    kl = jax.block_until_ready(categorical_kl_loss(P, Q))

    # Pure-JAX reference with the exact torch semantics.
    ref = jnp.mean(jnp.sum(P * (jnp.log(P) - jnp.log(Q)), axis=(-1, -2)), axis=0)

    assert kl.shape == ()
    assert bool(jnp.isfinite(kl))
    assert bool(jnp.abs(kl - ref) < 1e-5), (float(kl), float(ref))
    print("KERNEL_OK")
</pallas_src>

<mosaic_0001>
module attributes {stable_mosaic.version = 11 : i64} {
  func.func @categorical_kl_kernel(%arg0: memref<1x128xf32, #tpu.memory_space<vmem>>, %arg1: memref<1x128xf32, #tpu.memory_space<vmem>>, %arg2: memref<1x1xf32, #tpu.memory_space<smem>>) attributes {dimension_semantics = [], scalar_prefetch = 0 : i64, scratch_operands = 0 : i64, tpu.core_type = #tpu.core_type<tc>} {
    %c0 = arith.constant 0 : index
    %c0_0 = arith.constant 0 : index
    %0 = vector.load %arg0[%c0, %c0_0] : memref<1x128xf32, #tpu.memory_space<vmem>>, vector<1x128xf32>
    %c0_1 = arith.constant 0 : index
    %c0_2 = arith.constant 0 : index
    %1 = vector.load %arg1[%c0_1, %c0_2] : memref<1x128xf32, #tpu.memory_space<vmem>>, vector<1x128xf32>
    %2 = math.log %0 : vector<1x128xf32>
    %3 = math.log %1 : vector<1x128xf32>
    %4 = arith.subf %2, %3 : vector<1x128xf32>
    %5 = arith.mulf %0, %4 : vector<1x128xf32>
    %6 = vector.shape_cast %5 : vector<1x128xf32> to vector<1x1x128xf32>
    %cst = arith.constant dense<0.000000e+00> : vector<1xf32>
    %7 = vector.multi_reduction <add>, %6, %cst [1, 2] : vector<1x1x128xf32> to vector<1xf32>
    %8 = vector.shape_cast %7 : vector<1xf32> to vector<1x1x1xf32>
    %9 = vector.extract %8[0, 0, 0] : f32 from vector<1x1x1xf32>
    %cst_3 = arith.constant 5.000000e-01 : f32
    %10 = arith.mulf %9, %cst_3 : f32
    %c0_4 = arith.constant 0 : index
    %c0_5 = arith.constant 0 : index
    %11 = memref.load %arg2[%c0_4, %c0_5] : memref<1x1xf32, #tpu.memory_space<smem>>
    memref.store %10, %arg2[%c0_4, %c0_5] : memref<1x1xf32, #tpu.memory_space<smem>>
    return
  }
}

</mosaic_0001>

<llo_original>
// kernel: tpu_custom_call.1
$region0: #{tpu_custom_call.1}
  #allocation0 [shape = 'u32[]', space=smem, size = 0x4, offset = 0x4, fixed_abs, tag = 'smem constant byte address 0x4 - core index']
  #allocation1 [shape = 'u32[144,128]{1,0:T(1,128)}', space=vmem, size = 0x12000, scoped, tag = 'internal scratch']
  %s0 = inlined_call_operand.hbm [shape: f32[1,128], index: 0, kind: input, shape index: {}]
  %s1 = inlined_call_operand.vmem [shape: f32[1,128], index: 1, kind: input, shape index: {}]
  %s2 = inlined_call_operand.hbm [shape: f32[1,1], index: 2, kind: output, shape index: {}]
  %s3 = sld [smem:[#allocation0]]
  $region22: #{tpu_custom_call.1} parent=0
    _
  %s5 = ssub.s32 1, %s3
  %s6 = scalar_select 0, %s5, %s3
  $region1: #{tpu_custom_call.1} parent=0
    #allocation2 [shape = 'u8[512]{0}', space=vmem, size = 0x400, scoped, tag = 'input window, operand 0, single buffered']
    #allocation3 [shape = 's32[1]{0}', space=sflag, size = 0x4, scoped, tag = 'scoped memory for tpu_custom_call.1']
    #allocation4 [shape = 's32[1]{0}', space=sflag, size = 0x4, scoped, tag = 'scoped memory for tpu_custom_call.1']
    #allocation5 [shape = 'u8[512]{0}', space=smem, size = 0x200, scoped, tag = 'output window, operand 0, single buffered']
    %7 = vsyncpa [#allocation3], 0
    %8 = vsyncpa [#allocation4], 0
    // Predicated region
    $region2: #{tpu_custom_call.1} parent=1 // pred_check
      _
    $region3: #{tpu_custom_call.1} parent=1 // pred_check_branch
      %10 = sbr.rel (0) target = $region5
    $region4: #{tpu_custom_call.1} parent=1 // pred_region
      %s12 = ssub.s32 16, 16
      %13 = vsyncadd [#allocation3], %s12
      %s15 = sshll.u32 [#allocation2], 4
      %s16 = int_to_ptr.vmem [resolvable:$true] %s15
      %18 = dma.hbm_to_vmem [thread:$0]  %s0, 16, %s16, [#allocation3]
    $region5: #{tpu_custom_call.1} parent=1 // pred_fallthru
      _
    // Predicated region
    $region6: #{tpu_custom_call.1} parent=1 // pred_check
      _
    $region7: #{tpu_custom_call.1} parent=1 // pred_check_branch
      %20 = sbr.rel (0) target = $region9
    $region8: #{tpu_custom_call.1} parent=1 // pred_region
      _
    $region9: #{tpu_custom_call.1} parent=1 // pred_fallthru
      _
    // Predicated region
    $region10: #{tpu_custom_call.1} parent=1 // pred_check
      _
    $region11: #{tpu_custom_call.1} parent=1 // pred_check_branch
      %22 = sbr.rel (0) target = $region13
    $region12: #{tpu_custom_call.1} parent=1 // pred_region
      %23 = dma.done [#allocation3], 16
    $region13: #{tpu_custom_call.1} parent=1 // pred_fallthru
      _
    %v24 = vld [vmem:[#allocation2] sm:$0x1]
    %v25 = vld [vmem:[%s1] sm:$0x1]
    %v26 = vlog2.pop %v24
    %v27 = vmul.f32 %v26, 0.6931472
    %v28 = vlog2.pop %v25
    %v29 = vmul.f32 %v28, 0.6931472
    %v30 = vsub.f32 %v27, %v29
    %v31 = vmul.f32 %v24, %v30
    %vm32 = vcmask 1040384
    %v33 = vsel %vm32, %v31, 0.0
    %34 = vadd.xlane.f32.xlu0 %v33
    %v35 = vpop.xlane.xlu0 %34
    %v36 = vrot.slane %v35, 4
    %v37 = vadd.f32 %v35, %v36
    %v38 = vrot.slane %v37, 2
    %v39 = vadd.f32 %v37, %v38
    %v40 = vrot.slane %v39, 1
    %v41 = vadd.f32 %v39, %v40
    %s42 = vtos %v41
    %s43 = smul.f32 %s42, 0.5
    %s44 = scalar_lea.smem [#allocation5], 0
    %45 = sst [smem:[%s44]] %s43
    // Predicated region
    $region14: #{tpu_custom_call.1} parent=1 // pred_check
      _
    $region15: #{tpu_custom_call.1} parent=1 // pred_check_branch
      %47 = sbr.rel (0) target = $region17
    $region16: #{tpu_custom_call.1} parent=1 // pred_region
      %s49 = ssub.s32 16, 16
      %50 = vsyncadd [#allocation4], %s49
      %53 = dma.smem_to_hbm [#allocation5], 16, %s2, [#allocation4]
    $region17: #{tpu_custom_call.1} parent=1 // pred_fallthru
      _
    // Predicated region
    $region18: #{tpu_custom_call.1} parent=1 // pred_check
      _
    $region19: #{tpu_custom_call.1} parent=1 // pred_check_branch
      %55 = sbr.rel (0) target = $region21
    $region20: #{tpu_custom_call.1} parent=1 // pred_region
      %56 = dma.done [#allocation4], 16
    $region21: #{tpu_custom_call.1} parent=1 // pred_fallthru
      _
    %57 = sfence
    %58 = vsyncpa [#allocation3], 1
    %59 = vsyncpa [#allocation4], 1

</llo_original>
